<compile_context>
chip_gen: v5e
topology: v5e:2x2
jax: 0.10.0
libtpu: 0.0.40
codegen_flags: <defaults>
</compile_context>

<pallas_src>
import jax
import jax.numpy as jnp
from jax.experimental import pallas as pl
from jax.experimental.pallas import tpu as pltpu

DIM = 16           # feature dimension of z
HID = 50           # h_sizes = [50, 50, 50, 50, 50]
BATCH = 16
LEAKY_A = 0.1      # MLP default negative slope in the reference module


def rnvp_kernel(z_ref, mask_ref, w1_ref, wstack_ref, wts_ref,
                bstack_ref, bts_ref, x_ref):
    """Full-batch RNVP forward in one shot (everything resident in VMEM)."""
    z = z_ref[...]
    m = mask_ref[...]
    z1 = (1.0 - m) * z
    z2 = m * z

    def lrelu(x):
        # max(x, a*x) == LeakyReLU(a) for 0 < a < 1 (one vmul + one vmax)
        return jnp.maximum(x, LEAKY_A * x)

    b_all = bstack_ref[...]                      # (5, HID)

    # Layer 1: (B, DIM) @ (DIM, HID), then LeakyReLU.
    h = lrelu(jnp.dot(z2, w1_ref[...], preferred_element_type=jnp.float32)
              + b_all[0:1, :])
    # Layers 2..4: (B, HID) @ (HID, HID) + LeakyReLU.
    for i in range(3):
        h = lrelu(jnp.dot(h, wstack_ref[i], preferred_element_type=jnp.float32)
                  + b_all[i + 1:i + 2, :])
    # Layer 5: no trailing activation (MLP drops the last LeakyReLU).
    h = jnp.dot(h, wstack_ref[3], preferred_element_type=jnp.float32) + b_all[4:5, :]

    # Fused shift/scale heads: one (B, HID) @ (HID, 2*DIM) matmul, then slice.
    ts = jnp.dot(h, wts_ref[...], preferred_element_type=jnp.float32) + bts_ref[...]
    shift = ts[:, :DIM]
    scale = ts[:, DIM:]
    gate = jax.nn.sigmoid(scale)

    # Affine coupling combine.
    x_ref[...] = (z1 * gate + (1.0 - gate) * shift + z2).astype(x_ref.dtype)


def pack_params(params):
    """Pack the 14 per-layer tensors into 5 kernel operands."""
    (w1, b1, w2, b2, w3, b3, w4, b4, w5, b5, wt, bt, ws, bs) = params
    wstack = jnp.stack([w2, w3, w4, w5], axis=0)             # (4, HID, HID)
    wts = jnp.concatenate([wt, ws], axis=1)                  # (HID, 2*DIM)
    bstack = jnp.concatenate([b1, b2, b3, b4, b5], axis=0)   # (5, HID)
    bts = jnp.concatenate([bt, bs], axis=1)                  # (1, 2*DIM)
    return w1, wstack, wts, bstack, bts


def rnvp_forward(z, mask, packed):
    """packed = (w1, wstack, wts, bstack, bts); weights are (in, out)."""
    w1, wstack, wts, bstack, bts = packed
    B, D = z.shape
    vmem_spec = lambda: pl.BlockSpec(memory_space=pltpu.MemorySpace.VMEM)
    return pl.pallas_call(
        rnvp_kernel,
        out_shape=jax.ShapeDtypeStruct((B, D), z.dtype),
        in_specs=[vmem_spec() for _ in range(7)],
        out_specs=vmem_spec(),
    )(z, mask, w1, wstack, wts, bstack, bts)


def init_linear(key, fan_in, fan_out):
    """Deterministic init mimicking PyTorch nn.Linear defaults.
    Returns W of shape (fan_in, fan_out) and b of shape (1, fan_out).
    (PyTorch state_dict stores (out, in); transpose when importing.)"""
    kw, kb = jax.random.split(key)
    bound = 1.0 / jnp.sqrt(fan_in)
    w = jax.random.uniform(kw, (fan_in, fan_out), jnp.float32, -bound, bound)
    b = jax.random.uniform(kb, (1, fan_out), jnp.float32, -bound, bound)
    return w, b


def init_rnvp_params(key, dim, h_sizes):
    sizes = [dim] + list(h_sizes)
    keys = jax.random.split(key, len(sizes) + 1)  # 5 MLP layers + t + s
    params = []
    for i, (s1, s2) in enumerate(zip(sizes, sizes[1:])):
        w, b = init_linear(keys[i], s1, s2)
        params += [w, b]
    wt, bt = init_linear(keys[-2], sizes[-1], dim)
    ws, bs = init_linear(keys[-1], sizes[-1], dim)
    params += [wt, bt, ws, bs]
    return tuple(params)


def rnvp_reference(z, mask, params):
    """Pure-JAX reference of the same forward pass (unpacked params)."""
    (w1, b1, w2, b2, w3, b3, w4, b4, w5, b5, wt, bt, ws, bs) = params
    z1 = (1.0 - mask) * z
    z2 = mask * z

    def lrelu(x):
        return jnp.where(x >= 0, x, LEAKY_A * x)

    h = lrelu(z2 @ w1 + b1)
    h = lrelu(h @ w2 + b2)
    h = lrelu(h @ w3 + b3)
    h = lrelu(h @ w4 + b4)
    h = h @ w5 + b5
    shift = h @ wt + bt
    scale = h @ ws + bs
    gate = jax.nn.sigmoid(scale)
    return z1 * gate + (1.0 - gate) * shift + z2


if __name__ == "__main__":
    key = jax.random.PRNGKey(0)
    k_z, k_mask, k_params = jax.random.split(key, 3)

    z = jax.random.normal(k_z, (BATCH, DIM), jnp.float32)
    # torch.bernoulli(0.5 * ones_like(z)) -> fresh JAX mask per forward call.
    mask = jax.random.bernoulli(k_mask, 0.5, (BATCH, DIM)).astype(jnp.float32)

    params = init_rnvp_params(k_params, DIM, [HID] * 5)
    packed = pack_params(params)

    x = rnvp_forward(z, mask, packed)
    x = jax.block_until_ready(x)

    x_ref = rnvp_reference(z, mask, params)
    assert x.shape == (BATCH, DIM)
    assert jnp.allclose(x, x_ref, atol=1e-5, rtol=1e-5), "mismatch vs reference"

    # TODO(synk): log_det() (needs mask & gate) is not part of forward; expose
    # gate as a second kernel output if it is ever required.
    print("KERNEL_OK")
</pallas_src>

<mosaic_0001>
module attributes {stable_mosaic.version = 11 : i64} {
  func.func @rnvp_kernel(%arg0: memref<16x16xf32, #tpu.memory_space<vmem>>, %arg1: memref<16x16xf32, #tpu.memory_space<vmem>>, %arg2: memref<16x50xf32, #tpu.memory_space<vmem>>, %arg3: memref<4x50x50xf32, #tpu.memory_space<vmem>>, %arg4: memref<50x32xf32, #tpu.memory_space<vmem>>, %arg5: memref<5x50xf32, #tpu.memory_space<vmem>>, %arg6: memref<1x32xf32, #tpu.memory_space<vmem>>, %arg7: memref<16x16xf32, #tpu.memory_space<vmem>>) attributes {dimension_semantics = [], scalar_prefetch = 0 : i64, scratch_operands = 0 : i64, tpu.core_type = #tpu.core_type<tc>} {
    %c0 = arith.constant 0 : index
    %c0_0 = arith.constant 0 : index
    %0 = vector.load %arg0[%c0, %c0_0] : memref<16x16xf32, #tpu.memory_space<vmem>>, vector<16x16xf32>
    %c0_1 = arith.constant 0 : index
    %c0_2 = arith.constant 0 : index
    %1 = vector.load %arg1[%c0_1, %c0_2] : memref<16x16xf32, #tpu.memory_space<vmem>>, vector<16x16xf32>
    %cst = arith.constant 1.000000e+00 : f32
    %2 = vector.broadcast %cst : f32 to vector<16x16xf32>
    %3 = arith.subf %2, %1 : vector<16x16xf32>
    %4 = arith.mulf %3, %0 : vector<16x16xf32>
    %5 = arith.mulf %1, %0 : vector<16x16xf32>
    %c0_3 = arith.constant 0 : index
    %c0_4 = arith.constant 0 : index
    %6 = vector.load %arg5[%c0_3, %c0_4] : memref<5x50xf32, #tpu.memory_space<vmem>>, vector<5x50xf32>
    %c0_5 = arith.constant 0 : index
    %c0_6 = arith.constant 0 : index
    %7 = vector.load %arg2[%c0_5, %c0_6] : memref<16x50xf32, #tpu.memory_space<vmem>>, vector<16x50xf32>
    %cst_7 = arith.constant dense<0.000000e+00> : vector<16x50xf32>
    %8 = tpu.matmul %5, %7, %cst_7 {dimension_numbers = #tpu.dot_dimension_numbers<[1], [0], [0], [1], [0, 0, 1, 1], [], []>} : vector<16x16xf32>, vector<16x50xf32>, vector<16x50xf32> -> vector<16x50xf32>
    %9 = vector.extract_strided_slice %6 {offsets = [0, 0], sizes = [1, 50], strides = [1, 1]} : vector<5x50xf32> to vector<1x50xf32>
    %10 = vector.broadcast %9 : vector<1x50xf32> to vector<16x50xf32>
    %11 = arith.addf %8, %10 : vector<16x50xf32>
    %cst_8 = arith.constant 1.000000e-01 : f32
    %12 = vector.broadcast %cst_8 : f32 to vector<16x50xf32>
    %13 = arith.mulf %12, %11 : vector<16x50xf32>
    %14 = arith.maximumf %11, %13 : vector<16x50xf32>
    %c0_9 = arith.constant 0 : index
    %c0_10 = arith.constant 0 : index
    %c0_11 = arith.constant 0 : index
    %15 = vector.load %arg3[%c0_9, %c0_10, %c0_11] : memref<4x50x50xf32, #tpu.memory_space<vmem>>, vector<1x50x50xf32>
    %16 = vector.shape_cast %15 : vector<1x50x50xf32> to vector<50x50xf32>
    %cst_12 = arith.constant dense<0.000000e+00> : vector<16x50xf32>
    %17 = tpu.matmul %14, %16, %cst_12 {dimension_numbers = #tpu.dot_dimension_numbers<[1], [0], [0], [1], [0, 0, 1, 1], [], []>} : vector<16x50xf32>, vector<50x50xf32>, vector<16x50xf32> -> vector<16x50xf32>
    %18 = vector.extract_strided_slice %6 {offsets = [1, 0], sizes = [1, 50], strides = [1, 1]} : vector<5x50xf32> to vector<1x50xf32>
    %19 = vector.broadcast %18 : vector<1x50xf32> to vector<16x50xf32>
    %20 = arith.addf %17, %19 : vector<16x50xf32>
    %cst_13 = arith.constant 1.000000e-01 : f32
    %21 = vector.broadcast %cst_13 : f32 to vector<16x50xf32>
    %22 = arith.mulf %21, %20 : vector<16x50xf32>
    %23 = arith.maximumf %20, %22 : vector<16x50xf32>
    %c1 = arith.constant 1 : index
    %c0_14 = arith.constant 0 : index
    %c0_15 = arith.constant 0 : index
    %24 = vector.load %arg3[%c1, %c0_14, %c0_15] : memref<4x50x50xf32, #tpu.memory_space<vmem>>, vector<1x50x50xf32>
    %25 = vector.shape_cast %24 : vector<1x50x50xf32> to vector<50x50xf32>
    %cst_16 = arith.constant dense<0.000000e+00> : vector<16x50xf32>
    %26 = tpu.matmul %23, %25, %cst_16 {dimension_numbers = #tpu.dot_dimension_numbers<[1], [0], [0], [1], [0, 0, 1, 1], [], []>} : vector<16x50xf32>, vector<50x50xf32>, vector<16x50xf32> -> vector<16x50xf32>
    %27 = vector.extract_strided_slice %6 {offsets = [2, 0], sizes = [1, 50], strides = [1, 1]} : vector<5x50xf32> to vector<1x50xf32>
    %28 = vector.broadcast %27 : vector<1x50xf32> to vector<16x50xf32>
    %29 = arith.addf %26, %28 : vector<16x50xf32>
    %cst_17 = arith.constant 1.000000e-01 : f32
    %30 = vector.broadcast %cst_17 : f32 to vector<16x50xf32>
    %31 = arith.mulf %30, %29 : vector<16x50xf32>
    %32 = arith.maximumf %29, %31 : vector<16x50xf32>
    %c2 = arith.constant 2 : index
    %c0_18 = arith.constant 0 : index
    %c0_19 = arith.constant 0 : index
    %33 = vector.load %arg3[%c2, %c0_18, %c0_19] : memref<4x50x50xf32, #tpu.memory_space<vmem>>, vector<1x50x50xf32>
    %34 = vector.shape_cast %33 : vector<1x50x50xf32> to vector<50x50xf32>
    %cst_20 = arith.constant dense<0.000000e+00> : vector<16x50xf32>
    %35 = tpu.matmul %32, %34, %cst_20 {dimension_numbers = #tpu.dot_dimension_numbers<[1], [0], [0], [1], [0, 0, 1, 1], [], []>} : vector<16x50xf32>, vector<50x50xf32>, vector<16x50xf32> -> vector<16x50xf32>
    %36 = vector.extract_strided_slice %6 {offsets = [3, 0], sizes = [1, 50], strides = [1, 1]} : vector<5x50xf32> to vector<1x50xf32>
    %37 = vector.broadcast %36 : vector<1x50xf32> to vector<16x50xf32>
    %38 = arith.addf %35, %37 : vector<16x50xf32>
    %cst_21 = arith.constant 1.000000e-01 : f32
    %39 = vector.broadcast %cst_21 : f32 to vector<16x50xf32>
    %40 = arith.mulf %39, %38 : vector<16x50xf32>
    %41 = arith.maximumf %38, %40 : vector<16x50xf32>
    %c3 = arith.constant 3 : index
    %c0_22 = arith.constant 0 : index
    %c0_23 = arith.constant 0 : index
    %42 = vector.load %arg3[%c3, %c0_22, %c0_23] : memref<4x50x50xf32, #tpu.memory_space<vmem>>, vector<1x50x50xf32>
    %43 = vector.shape_cast %42 : vector<1x50x50xf32> to vector<50x50xf32>
    %cst_24 = arith.constant dense<0.000000e+00> : vector<16x50xf32>
    %44 = tpu.matmul %41, %43, %cst_24 {dimension_numbers = #tpu.dot_dimension_numbers<[1], [0], [0], [1], [0, 0, 1, 1], [], []>} : vector<16x50xf32>, vector<50x50xf32>, vector<16x50xf32> -> vector<16x50xf32>
    %45 = vector.extract_strided_slice %6 {offsets = [4, 0], sizes = [1, 50], strides = [1, 1]} : vector<5x50xf32> to vector<1x50xf32>
    %46 = vector.broadcast %45 : vector<1x50xf32> to vector<16x50xf32>
    %47 = arith.addf %44, %46 : vector<16x50xf32>
    %c0_25 = arith.constant 0 : index
    %c0_26 = arith.constant 0 : index
    %48 = vector.load %arg4[%c0_25, %c0_26] : memref<50x32xf32, #tpu.memory_space<vmem>>, vector<50x32xf32>
    %cst_27 = arith.constant dense<0.000000e+00> : vector<16x32xf32>
    %49 = tpu.matmul %47, %48, %cst_27 {dimension_numbers = #tpu.dot_dimension_numbers<[1], [0], [0], [1], [0, 0, 1, 1], [], []>} : vector<16x50xf32>, vector<50x32xf32>, vector<16x32xf32> -> vector<16x32xf32>
    %c0_28 = arith.constant 0 : index
    %c0_29 = arith.constant 0 : index
    %50 = vector.load %arg6[%c0_28, %c0_29] : memref<1x32xf32, #tpu.memory_space<vmem>>, vector<1x32xf32>
    %51 = vector.broadcast %50 : vector<1x32xf32> to vector<16x32xf32>
    %52 = arith.addf %49, %51 : vector<16x32xf32>
    %53 = vector.extract_strided_slice %52 {offsets = [0, 0], sizes = [16, 16], strides = [1, 1]} : vector<16x32xf32> to vector<16x16xf32>
    %54 = vector.extract_strided_slice %52 {offsets = [0, 16], sizes = [16, 16], strides = [1, 1]} : vector<16x32xf32> to vector<16x16xf32>
    %55 = arith.negf %54 : vector<16x16xf32>
    %56 = math.exp %55 : vector<16x16xf32>
    %cst_30 = arith.constant 1.000000e+00 : f32
    %57 = vector.broadcast %cst_30 : f32 to vector<16x16xf32>
    %58 = arith.addf %57, %56 : vector<16x16xf32>
    %59 = arith.divf %57, %58 : vector<16x16xf32>
    %60 = arith.mulf %4, %59 : vector<16x16xf32>
    %cst_31 = arith.constant 1.000000e+00 : f32
    %61 = vector.broadcast %cst_31 : f32 to vector<16x16xf32>
    %62 = arith.subf %61, %59 : vector<16x16xf32>
    %63 = arith.mulf %62, %53 : vector<16x16xf32>
    %64 = arith.addf %60, %63 : vector<16x16xf32>
    %65 = arith.addf %64, %5 : vector<16x16xf32>
    %c0_32 = arith.constant 0 : index
    %c0_33 = arith.constant 0 : index
    %66 = vector.load %arg7[%c0_32, %c0_33] : memref<16x16xf32, #tpu.memory_space<vmem>>, vector<16x16xf32>
    tpu.vector_store %arg7[%c0_32, %c0_33], %65 {strides = array<i32>} : memref<16x16xf32, #tpu.memory_space<vmem>>, vector<16x16xf32>,
    return
  }
}

</mosaic_0001>

<llo_original>
// kernel: tpu_custom_call.1
$region0: #{tpu_custom_call.1}
  #allocation0 [shape = 'u32[]', space=smem, size = 0x4, offset = 0x4, fixed_abs, tag = 'smem constant byte address 0x4 - core index']
  #allocation1 [shape = 'u32[72,128]{1,0:T(1,128)}', space=vmem, size = 0x9000, scoped, tag = 'internal scratch']
  %s0 = inlined_call_operand.vmem [shape: f32[16,16], index: 0, kind: input, shape index: {}]
  %s1 = inlined_call_operand.vmem [shape: f32[16,16], index: 1, kind: input, shape index: {}]
  %s2 = inlined_call_operand.vmem [shape: f32[16,50], index: 2, kind: input, shape index: {}]
  %s3 = inlined_call_operand.vmem [shape: f32[4,50,50], index: 3, kind: input, shape index: {}]
  %s4 = inlined_call_operand.vmem [shape: f32[50,32], index: 4, kind: input, shape index: {}]
  %s5 = inlined_call_operand.vmem [shape: f32[5,50], index: 5, kind: input, shape index: {}]
  %s6 = inlined_call_operand.vmem [shape: f32[1,32], index: 6, kind: input, shape index: {}]
  %s7 = inlined_call_operand.hbm [shape: f32[16,16], index: 7, kind: output, shape index: {}]
  %s8 = sld [smem:[#allocation0]]
  $region38: #{tpu_custom_call.1} parent=0
    _
  %s10 = ssub.s32 1, %s8
  %s11 = scalar_select 0, %s10, %s8
  $region1: #{tpu_custom_call.1} parent=0
    #allocation2 [shape = 'u8[8192]{0}', space=vmem, size = 0x2000, scoped, tag = 'output window, operand 0, single buffered']
    #allocation3 [shape = 's32[1]{0}', space=sflag, size = 0x4, scoped, tag = 'scoped memory for tpu_custom_call.1']
    %12 = vsyncpa [#allocation3], 0
    // Predicated region
    $region2: #{tpu_custom_call.1} parent=1 // pred_check
      _
    $region3: #{tpu_custom_call.1} parent=1 // pred_check_branch
      %14 = sbr.rel (0) target = $region5
    $region4: #{tpu_custom_call.1} parent=1 // pred_region
      _
    $region5: #{tpu_custom_call.1} parent=1 // pred_fallthru
      _
    // Predicated region
    $region6: #{tpu_custom_call.1} parent=1 // pred_check
      _
    $region7: #{tpu_custom_call.1} parent=1 // pred_check_branch
      %16 = sbr.rel (0) target = $region9
    $region8: #{tpu_custom_call.1} parent=1 // pred_region
      _
    $region9: #{tpu_custom_call.1} parent=1 // pred_fallthru
      _
    // Predicated region
    $region10: #{tpu_custom_call.1} parent=1 // pred_check
      _
    $region11: #{tpu_custom_call.1} parent=1 // pred_check_branch
      %18 = sbr.rel (0) target = $region13
    $region12: #{tpu_custom_call.1} parent=1 // pred_region
      _
    $region13: #{tpu_custom_call.1} parent=1 // pred_fallthru
      _
    // Predicated region
    $region14: #{tpu_custom_call.1} parent=1 // pred_check
      _
    $region15: #{tpu_custom_call.1} parent=1 // pred_check_branch
      %20 = sbr.rel (0) target = $region17
    $region16: #{tpu_custom_call.1} parent=1 // pred_region
      _
    $region17: #{tpu_custom_call.1} parent=1 // pred_fallthru
      _
    // Predicated region
    $region18: #{tpu_custom_call.1} parent=1 // pred_check
      _
    $region19: #{tpu_custom_call.1} parent=1 // pred_check_branch
      %22 = sbr.rel (0) target = $region21
    $region20: #{tpu_custom_call.1} parent=1 // pred_region
      _
    $region21: #{tpu_custom_call.1} parent=1 // pred_fallthru
      _
    // Predicated region
    $region22: #{tpu_custom_call.1} parent=1 // pred_check
      _
    $region23: #{tpu_custom_call.1} parent=1 // pred_check_branch
      %24 = sbr.rel (0) target = $region25
    $region24: #{tpu_custom_call.1} parent=1 // pred_region
      _
    $region25: #{tpu_custom_call.1} parent=1 // pred_fallthru
      _
    // Predicated region
    $region26: #{tpu_custom_call.1} parent=1 // pred_check
      _
    $region27: #{tpu_custom_call.1} parent=1 // pred_check_branch
      %26 = sbr.rel (0) target = $region29
    $region28: #{tpu_custom_call.1} parent=1 // pred_region
      _
    $region29: #{tpu_custom_call.1} parent=1 // pred_fallthru
      _
    %v27 = vld [vmem:[%s0] sm:$0xff]
    %v28 = vld [vmem:[%s0 + $0x8] sm:$0xff]
    %v29 = vld [vmem:[%s1] sm:$0xff]
    %v30 = vld [vmem:[%s1 + $0x8] sm:$0xff]
    %v31 = vsub.f32 1.0, %v29
    %v32 = vsub.f32 1.0, %v30
    %v33 = vmul.f32 %v31, %v27
    %v34 = vmul.f32 %v32, %v28
    %v35 = vmul.f32 %v29, %v27
    %v36 = vmul.f32 %v30, %v28
    %v37 = vld [vmem:[%s5] sm:$0x1f]
    %v38 = vld [vmem:[%s2] sm:$0xff]
    %v39 = vld [vmem:[%s2 + $0x8] sm:$0xff]
    %v40 = vperm.slane %v37, 0
    %vm41 = vcmask 130048
    %v43 = vsel %vm41, %v35, 0
    %v46 = vsel %vm41, %v36, 0
    %48 = vmatpush.msra.mxu0 0.0
    %49 = vmatpush.msra.mxu0 0.0
    %50 = vmatpush.msra.mxu0 0.0
    %51 = vmatpush.msra.mxu0 0.0
    %52 = vmatpush.msra.mxu0 0.0
    %53 = vmatpush.msra.mxu0 0.0
    %54 = vmatpush.msra.mxu0 0.0
    %55 = vmatpush.msra.mxu0 0.0
    %56 = vmatpush.msra.mxu0 0.0
    %57 = vmatpush.msra.mxu0 0.0
    %58 = vmatpush.msra.mxu0 0.0
    %59 = vmatpush.msra.mxu0 0.0
    %60 = vmatpush.msra.mxu0 0.0
    %61 = vmatpush.msra.mxu0 0.0
    %62 = vmatpush.msra.mxu0 %v39
    %63 = vmatpush.msra.mxu0 %v38
    %64 = vmatmul.f32.gmra.mxu0 %v43
    %v65 = vpop.f32.mrf.mxu0
    %v66 = vadd.f32 %v40, %v65
    %67 = vmatmul.f32.gmra.mxu0 %v46
    %v68 = vpop.f32.mrf.mxu0
    %v69 = vadd.f32 %v40, %v68
    %70 = vdwg.mxu0
    %v71 = vmul.f32 %v66, 0.1
    %v72 = vmul.f32 %v69, 0.1
    %v73 = vmax.f32 %v66, %v71
    %v74 = vmax.f32 %v69, %v72
    %v75 = vld [vmem:[%s3] sm:$0xff]
    %v76 = vld [vmem:[%s3 + $0x8] sm:$0xff]
    %v77 = vld [vmem:[%s3 + $0x10] sm:$0xff]
    %v78 = vld [vmem:[%s3 + $0x18] sm:$0xff]
    %v79 = vld [vmem:[%s3 + $0x20] sm:$0xff]
    %v80 = vld [vmem:[%s3 + $0x28] sm:$0xff]
    %v81 = vld [vmem:[%s3 + $0x30] sm:$0x3]
    %v82 = vperm.slane %v37, 1
    %vm83 = vcmask 408576
    %v85 = vsel %vm83, %v73, 0
    %v88 = vsel %vm83, %v74, 0
    %vm90 = vcmask 1041408
    %v92 = vsel %vm90, %v81, 0
    %94 = vmatpush.msra.mxu0 0.0
    %95 = vmatpush.msra.mxu0 0.0
    %96 = vmatpush.msra.mxu0 0.0
    %97 = vmatpush.msra.mxu0 0.0
    %98 = vmatpush.msra.mxu0 0.0
    %99 = vmatpush.msra.mxu0 0.0
    %100 = vmatpush.msra.mxu0 0.0
    %101 = vmatpush.msra.mxu0 0.0
    %102 = vmatpush.msra.mxu0 0.0
    %103 = vmatpush.msra.mxu0 %v92
    %104 = vmatpush.msra.mxu0 %v80
    %105 = vmatpush.msra.mxu0 %v79
    %106 = vmatpush.msra.mxu0 %v78
    %107 = vmatpush.msra.mxu0 %v77
    %108 = vmatpush.msra.mxu0 %v76
    %109 = vmatpush.msra.mxu0 %v75
    %110 = vmatmul.f32.gmra.mxu0 %v85
    %v111 = vpop.f32.mrf.mxu0
    %v112 = vadd.f32 %v82, %v111
    %113 = vmatmul.f32.gmra.mxu0 %v88
    %v114 = vpop.f32.mrf.mxu0
    %v115 = vadd.f32 %v82, %v114
    %116 = vdwg.mxu0
    %v117 = vmul.f32 %v112, 0.1
    %v118 = vmul.f32 %v115, 0.1
    %v119 = vmax.f32 %v112, %v117
    %v120 = vmax.f32 %v115, %v118
    %s121 = scalar_lea.vmem %s3, 56
    %v122 = vld [vmem:[%s121] sm:$0xff]
    %v123 = vld [vmem:[%s121 + $0x8] sm:$0xff]
    %v124 = vld [vmem:[%s121 + $0x10] sm:$0xff]
    %v125 = vld [vmem:[%s121 + $0x18] sm:$0xff]
    %v126 = vld [vmem:[%s121 + $0x20] sm:$0xff]
    %v127 = vld [vmem:[%s121 + $0x28] sm:$0xff]
    %v128 = vld [vmem:[%s121 + $0x30] sm:$0x3]
    %v129 = vperm.slane %v37, 2
    %v131 = vsel %vm83, %v119, 0
    %v134 = vsel %vm83, %v120, 0
    %v137 = vsel %vm90, %v128, 0
    %139 = vmatpush.msra.mxu0 0.0
    %140 = vmatpush.msra.mxu0 0.0
    %141 = vmatpush.msra.mxu0 0.0
    %142 = vmatpush.msra.mxu0 0.0
    %143 = vmatpush.msra.mxu0 0.0
    %144 = vmatpush.msra.mxu0 0.0
    %145 = vmatpush.msra.mxu0 0.0
    %146 = vmatpush.msra.mxu0 0.0
    %147 = vmatpush.msra.mxu0 0.0
    %148 = vmatpush.msra.mxu0 %v137
    %149 = vmatpush.msra.mxu0 %v127
    %150 = vmatpush.msra.mxu0 %v126
    %151 = vmatpush.msra.mxu0 %v125
    %152 = vmatpush.msra.mxu0 %v124
    %153 = vmatpush.msra.mxu0 %v123
    %154 = vmatpush.msra.mxu0 %v122
    %155 = vmatmul.f32.gmra.mxu0 %v131
    %v156 = vpop.f32.mrf.mxu0
    %v157 = vadd.f32 %v129, %v156
    %158 = vmatmul.f32.gmra.mxu0 %v134
    %v159 = vpop.f32.mrf.mxu0
    %v160 = vadd.f32 %v129, %v159
    %161 = vdwg.mxu0
    %v162 = vmul.f32 %v157, 0.1
    %v163 = vmul.f32 %v160, 0.1
    %v164 = vmax.f32 %v157, %v162
    %v165 = vmax.f32 %v160, %v163
    %s166 = scalar_lea.vmem %s3, 112
    %v167 = vld [vmem:[%s166] sm:$0xff]
    %v168 = vld [vmem:[%s166 + $0x8] sm:$0xff]
    %v169 = vld [vmem:[%s166 + $0x10] sm:$0xff]
    %v170 = vld [vmem:[%s166 + $0x18] sm:$0xff]
    %v171 = vld [vmem:[%s166 + $0x20] sm:$0xff]
    %v172 = vld [vmem:[%s166 + $0x28] sm:$0xff]
    %v173 = vld [vmem:[%s166 + $0x30] sm:$0x3]
    %v174 = vperm.slane %v37, 3
    %v176 = vsel %vm83, %v164, 0
    %v179 = vsel %vm83, %v165, 0
    %v182 = vsel %vm90, %v173, 0
    %184 = vmatpush.msra.mxu0 0.0
    %185 = vmatpush.msra.mxu0 0.0
    %186 = vmatpush.msra.mxu0 0.0
    %187 = vmatpush.msra.mxu0 0.0
    %188 = vmatpush.msra.mxu0 0.0
    %189 = vmatpush.msra.mxu0 0.0
    %190 = vmatpush.msra.mxu0 0.0
    %191 = vmatpush.msra.mxu0 0.0
    %192 = vmatpush.msra.mxu0 0.0
    %193 = vmatpush.msra.mxu0 %v182
    %194 = vmatpush.msra.mxu0 %v172
    %195 = vmatpush.msra.mxu0 %v171
    %196 = vmatpush.msra.mxu0 %v170
    %197 = vmatpush.msra.mxu0 %v169
    %198 = vmatpush.msra.mxu0 %v168
    %199 = vmatpush.msra.mxu0 %v167
    %200 = vmatmul.f32.gmra.mxu0 %v176
    %v201 = vpop.f32.mrf.mxu0
    %v202 = vadd.f32 %v174, %v201
    %203 = vmatmul.f32.gmra.mxu0 %v179
    %v204 = vpop.f32.mrf.mxu0
    %v205 = vadd.f32 %v174, %v204
    %206 = vdwg.mxu0
    %v207 = vmul.f32 %v202, 0.1
    %v208 = vmul.f32 %v205, 0.1
    %v209 = vmax.f32 %v202, %v207
    %v210 = vmax.f32 %v205, %v208
    %s211 = scalar_lea.vmem %s3, 168
    %v212 = vld [vmem:[%s211] sm:$0xff]
    %v213 = vld [vmem:[%s211 + $0x8] sm:$0xff]
    %v214 = vld [vmem:[%s211 + $0x10] sm:$0xff]
    %v215 = vld [vmem:[%s211 + $0x18] sm:$0xff]
    %v216 = vld [vmem:[%s211 + $0x20] sm:$0xff]
    %v217 = vld [vmem:[%s211 + $0x28] sm:$0xff]
    %v218 = vld [vmem:[%s211 + $0x30] sm:$0x3]
    %v219 = vperm.slane %v37, 4
    %v221 = vsel %vm83, %v209, 0
    %v224 = vsel %vm83, %v210, 0
    %v227 = vsel %vm90, %v218, 0
    %229 = vmatpush.msra.mxu0 0.0
    %230 = vmatpush.msra.mxu0 0.0
    %231 = vmatpush.msra.mxu0 0.0
    %232 = vmatpush.msra.mxu0 0.0
    %233 = vmatpush.msra.mxu0 0.0
    %234 = vmatpush.msra.mxu0 0.0
    %235 = vmatpush.msra.mxu0 0.0
    %236 = vmatpush.msra.mxu0 0.0
    %237 = vmatpush.msra.mxu0 0.0
    %238 = vmatpush.msra.mxu0 %v227
    %239 = vmatpush.msra.mxu0 %v217
    %240 = vmatpush.msra.mxu0 %v216
    %241 = vmatpush.msra.mxu0 %v215
    %242 = vmatpush.msra.mxu0 %v214
    %243 = vmatpush.msra.mxu0 %v213
    %244 = vmatpush.msra.mxu0 %v212
    %245 = vmatmul.f32.gmra.mxu0 %v221
    %v246 = vpop.f32.mrf.mxu0
    %v247 = vadd.f32 %v219, %v246
    %248 = vmatmul.f32.gmra.mxu0 %v224
    %v249 = vpop.f32.mrf.mxu0
    %v250 = vadd.f32 %v219, %v249
    %251 = vdwg.mxu0
    %v252 = vld [vmem:[%s4] sm:$0xff]
    %v253 = vld [vmem:[%s4 + $0x8] sm:$0xff]
    %v254 = vld [vmem:[%s4 + $0x10] sm:$0xff]
    %v255 = vld [vmem:[%s4 + $0x18] sm:$0xff]
    %v256 = vld [vmem:[%s4 + $0x20] sm:$0xff]
    %v257 = vld [vmem:[%s4 + $0x28] sm:$0xff]
    %v258 = vld [vmem:[%s4 + $0x30] sm:$0x3]
    %v259 = vld [vmem:[%s6] sm:$0x1]
    %v261 = vperm.slane %v259, 0
    %v264 = vsel %vm83, %v247, 0
    %v267 = vsel %vm83, %v250, 0
    %v270 = vsel %vm90, %v258, 0
    %272 = vmatpush.msra.mxu0 0.0
    %273 = vmatpush.msra.mxu0 0.0
    %274 = vmatpush.msra.mxu0 0.0
    %275 = vmatpush.msra.mxu0 0.0
    %276 = vmatpush.msra.mxu0 0.0
    %277 = vmatpush.msra.mxu0 0.0
    %278 = vmatpush.msra.mxu0 0.0
    %279 = vmatpush.msra.mxu0 0.0
    %280 = vmatpush.msra.mxu0 0.0
    %281 = vmatpush.msra.mxu0 %v270
    %282 = vmatpush.msra.mxu0 %v257
    %283 = vmatpush.msra.mxu0 %v256
    %284 = vmatpush.msra.mxu0 %v255
    %285 = vmatpush.msra.mxu0 %v254
    %286 = vmatpush.msra.mxu0 %v253
    %287 = vmatpush.msra.mxu0 %v252
    %288 = vmatmul.f32.gmra.mxu0 %v264
    %v289 = vpop.f32.mrf.mxu0
    %v290 = vadd.f32 %v261, %v289
    %291 = vmatmul.f32.gmra.mxu0 %v267
    %v292 = vpop.f32.mrf.mxu0
    %v293 = vadd.f32 %v261, %v292
    %294 = vdwg.mxu0
    %v295 = vxor.u32 %v290, 2147483648
    %v296 = vxor.u32 %v293, 2147483648
    %v297 = vmul.f32 %v295, 1.442695
    %v298 = vpow.pop %v297
    %v299 = vmul.f32 %v296, 1.442695
    %v300 = vpow.pop %v299
    %v301 = vadd.f32 %v298, 1.0
    %v302 = vadd.f32 %v300, 1.0
    %v303 = vrcp.pop %v301
    %v304 = vmul.f32 %v301, %v303
    %v305 = vsub.f32 1.0, %v304
    %v306 = vmul.f32 %v303, %v305
    %v307 = vadd.f32 %v303, %v306
    %vm308 = vweird.f32 %v301
    %vm309 = vweird.f32 %v303
    %vm310 = vmor %vm308, %vm309
    %v311 = vsel %vm310, %v303, %v307
    %v312 = vand.u32 2147483647, %v301
    %vm313 = vcmp.eq.f32.partialorder %v312, 8.507059e+37
    %v314 = vand.u32 %v301, 2147483648
    %v315 = vor.u32 1.1754944e-38, %v314
    %v316 = vsel %vm313, %v315, %v311
    %v317 = vmul.f32 1.0, %v316
    %v318 = vrcp.pop %v302
    %v319 = vmul.f32 %v302, %v318
    %v320 = vsub.f32 1.0, %v319
    %v321 = vmul.f32 %v318, %v320
    %v322 = vadd.f32 %v318, %v321
    %vm323 = vweird.f32 %v302
    %vm324 = vweird.f32 %v318
    %vm325 = vmor %vm323, %vm324
    %v326 = vsel %vm325, %v318, %v322
    %v327 = vand.u32 2147483647, %v302
    %vm328 = vcmp.eq.f32.partialorder %v327, 8.507059e+37
    %v329 = vand.u32 %v302, 2147483648
    %v330 = vor.u32 1.1754944e-38, %v329
    %v331 = vsel %vm328, %v330, %v326
    %v332 = vmul.f32 1.0, %v331
    %335 = vrot.lane.b32.xlu0 %v317, 112
    %v336 = vpop.permute.xlu0 %335
    %337 = vrot.lane.b32.xlu0 %v332, 112
    %v338 = vpop.permute.xlu0 %337
    %v341 = vmul.f32 %v33, %v336
    %v342 = vmul.f32 %v34, %v338
    %v343 = vsub.f32 1.0, %v317
    %v344 = vsub.f32 1.0, %v332
    %347 = vrot.lane.b32.xlu0 %v290, 16
    %v348 = vpop.permute.xlu0 %347
    %349 = vrot.lane.b32.xlu0 %v293, 16
    %v350 = vpop.permute.xlu0 %349
    %v353 = vmul.f32 %v343, %v348
    %v354 = vmul.f32 %v344, %v350
    %357 = vrot.lane.b32.xlu0 %v353, 112
    %v358 = vpop.permute.xlu0 %357
    %359 = vrot.lane.b32.xlu0 %v354, 112
    %v360 = vpop.permute.xlu0 %359
    %v363 = vadd.f32 %v341, %v358
    %v364 = vadd.f32 %v342, %v360
    %v365 = vadd.f32 %v363, %v35
    %v366 = vadd.f32 %v364, %v36
    %367 = vst.msk [vmem:[#allocation2] sm:$0xff] %vm41, %v365
    %368 = vst.msk [vmem:[#allocation2 + $0x8] sm:$0xff] %vm41, %v366
    // Predicated region
    $region30: #{tpu_custom_call.1} parent=1 // pred_check
      _
    $region31: #{tpu_custom_call.1} parent=1 // pred_check_branch
      %370 = sbr.rel (0) target = $region33
    $region32: #{tpu_custom_call.1} parent=1 // pred_region
      %372 = vsyncadd [#allocation3], 0
      %s373 = sshll.u32 [#allocation2], 4
      %s374 = int_to_ptr.vmem [resolvable:$true] %s373
      %s375 = sshll.u32 %s7, 4
      %s376 = int_to_ptr.hbm [resolvable:$true] %s375
      %381 = dma.vmem_to_hbm [thread:$0]  %s374, 256, %s376, [#allocation3], 128, 128, 8
    $region33: #{tpu_custom_call.1} parent=1 // pred_fallthru
      _
    // Predicated region
    $region34: #{tpu_custom_call.1} parent=1 // pred_check
      _
    $region35: #{tpu_custom_call.1} parent=1 // pred_check_branch
      %383 = sbr.rel (0) target = $region37
    $region36: #{tpu_custom_call.1} parent=1 // pred_region
      %385 = dma.done [#allocation3], 256
    $region37: #{tpu_custom_call.1} parent=1 // pred_fallthru
      _
    %386 = vsyncpa [#allocation3], 1

</llo_original>
